<compile_context>
chip_gen: v5e
topology: v5e:2x2
jax: 0.10.0
libtpu: 0.0.40
codegen_flags: <defaults>
</compile_context>

<pallas_src>
import jax
import jax.numpy as jnp
from jax.experimental import pallas as pl
from jax.experimental.pallas import tpu as pltpu


def _gate_softmax2_kernel(w_ref, o_ref):
    """Stable closed-form softmax over axis 0 of the (2, 1) gate weights."""
    x = w_ref[...].astype(jnp.float32)            # (2, 1)
    w0 = x[0:1, :]                                # (1, 1)
    w1 = x[1:2, :]                                # (1, 1)
    # softmax([w0, w1])_0 = 1 / (1 + exp(w1 - w0)) = sigmoid(w0 - w1)
    # jax.nn.sigmoid is numerically stable for arbitrarily large |w0 - w1|.
    p0 = jax.nn.sigmoid(w0 - w1)                  # EUP exp, VPU select/add
    p1 = 1.0 - p0                                 # exact complement, sums to 1
    # Direct row stores — no axis-0 concatenate (no XLU sublane shuffle).
    o_ref[0:1, :] = p0.astype(o_ref.dtype)
    o_ref[1:2, :] = p1.astype(o_ref.dtype)


def multi_task_gate_forward(gate_w: jax.Array) -> jax.Array:
    """Equivalent of MultiTaskGate.forward(): softmax(gate_w, dim=0)."""
    return pl.pallas_call(
        _gate_softmax2_kernel,
        out_shape=jax.ShapeDtypeStruct(gate_w.shape, gate_w.dtype),
        # No grid: whole-array blocks resident in VMEM, no grid-loop overhead.
        in_specs=[pl.BlockSpec(memory_space=pltpu.MemorySpace.VMEM)],
        out_specs=pl.BlockSpec(memory_space=pltpu.MemorySpace.VMEM),
        # Tell XLA this custom call is tiny so it schedules freely around it.
        cost_estimate=pl.CostEstimate(flops=8, transcendentals=1,
                                      bytes_accessed=16),
    )(gate_w)


def multi_task_gate_forward_fused(gate_w: jax.Array) -> jax.Array:
    """Recommended in-model path: plain JAX, fused by XLA into the consumer.

    Use this (or pass gate_w via scalar-prefetch into the downstream Pallas
    kernel) when the gate feeds a weighted sum of task losses/activations;
    the standalone kernel above is pure dispatch overhead by comparison.
    """
    p0 = jax.nn.sigmoid(gate_w[0:1, :] - gate_w[1:2, :])
    return jnp.concatenate([p0, 1.0 - p0], axis=0).astype(gate_w.dtype)


if __name__ == "__main__":
    # Deterministic parameter init mirroring torch.rand([2, 1]) (uniform [0, 1)).
    key = jax.random.PRNGKey(0)
    gate_w = jax.random.uniform(key, (2, 1), dtype=jnp.float32)

    gate_output = multi_task_gate_forward(gate_w)
    gate_output = jax.block_until_ready(gate_output)

    # Sanity check against plain-JAX reference (softmax over dim 0).
    ref = jax.nn.softmax(gate_w, axis=0)
    assert gate_output.shape == (2, 1)
    # Exact (non-approx) sigmoid path -> tight tolerance.
    assert jnp.allclose(gate_output, ref, atol=1e-5), (gate_output, ref)
    assert jnp.allclose(jnp.sum(gate_output, axis=0), 1.0, atol=1e-6)

    # Numerical-stability check: huge learned logit gap must not overflow.
    gate_w_big = jnp.array([[100.0], [-100.0]], dtype=jnp.float32)
    out_big = jax.block_until_ready(multi_task_gate_forward(gate_w_big))
    ref_big = jax.nn.softmax(gate_w_big, axis=0)
    assert jnp.all(jnp.isfinite(out_big))
    assert jnp.allclose(out_big, ref_big, atol=1e-6), (out_big, ref_big)

    # Fused (plain-JAX) path agrees too.
    assert jnp.allclose(multi_task_gate_forward_fused(gate_w), ref, atol=1e-6)

    print("KERNEL_OK")
</pallas_src>

<mosaic_0001>
module attributes {stable_mosaic.version = 11 : i64} {
  func.func @_gate_softmax2_kernel(%arg0: memref<2x1xf32, #tpu.memory_space<vmem>>, %arg1: memref<2x1xf32, #tpu.memory_space<vmem>>) attributes {dimension_semantics = [], scalar_prefetch = 0 : i64, scratch_operands = 0 : i64, tpu.core_type = #tpu.core_type<tc>} {
    %c0 = arith.constant 0 : index
    %c0_0 = arith.constant 0 : index
    %0 = vector.load %arg0[%c0, %c0_0] : memref<2x1xf32, #tpu.memory_space<vmem>>, vector<2x1xf32>
    %1 = vector.extract_strided_slice %0 {offsets = [0, 0], sizes = [1, 1], strides = [1, 1]} : vector<2x1xf32> to vector<1x1xf32>
    %2 = vector.extract_strided_slice %0 {offsets = [1, 0], sizes = [1, 1], strides = [1, 1]} : vector<2x1xf32> to vector<1x1xf32>
    %3 = arith.subf %1, %2 : vector<1x1xf32>
    %4 = arith.negf %3 : vector<1x1xf32>
    %5 = math.exp %4 : vector<1x1xf32>
    %cst = arith.constant 1.000000e+00 : f32
    %6 = vector.broadcast %cst : f32 to vector<1x1xf32>
    %7 = arith.addf %6, %5 : vector<1x1xf32>
    %8 = arith.divf %6, %7 : vector<1x1xf32>
    %cst_1 = arith.constant 1.000000e+00 : f32
    %9 = vector.broadcast %cst_1 : f32 to vector<1x1xf32>
    %10 = arith.subf %9, %8 : vector<1x1xf32>
    %c0_2 = arith.constant 0 : index
    %c0_3 = arith.constant 0 : index
    %11 = vector.load %arg1[%c0_2, %c0_3] : memref<2x1xf32, #tpu.memory_space<vmem>>, vector<1x1xf32>
    tpu.vector_store %arg1[%c0_2, %c0_3], %8 {strides = array<i32>} : memref<2x1xf32, #tpu.memory_space<vmem>>, vector<1x1xf32>,
    %c1 = arith.constant 1 : index
    %c0_4 = arith.constant 0 : index
    %12 = vector.load %arg1[%c1, %c0_4] : memref<2x1xf32, #tpu.memory_space<vmem>>, vector<1x1xf32>
    tpu.vector_store %arg1[%c1, %c0_4], %10 {strides = array<i32>} : memref<2x1xf32, #tpu.memory_space<vmem>>, vector<1x1xf32>,
    return
  }
}

</mosaic_0001>

<llo_original>
// kernel: tpu_custom_call.1
$region0: #{tpu_custom_call.1}
  #allocation0 [shape = 'u32[]', space=smem, size = 0x4, offset = 0x4, fixed_abs, tag = 'smem constant byte address 0x4 - core index']
  #allocation1 [shape = 'u32[72,128]{1,0:T(1,128)}', space=vmem, size = 0x9000, scoped, tag = 'internal scratch']
  %s0 = inlined_call_operand.vmem [shape: f32[2,1], index: 0, kind: input, shape index: {}]
  %s1 = inlined_call_operand.vmem [shape: f32[2,1], index: 1, kind: output, shape index: {}]
  %s2 = sld [smem:[#allocation0]]
  $region14: #{tpu_custom_call.1} parent=0
    _
  %s4 = ssub.s32 1, %s2
  %s5 = scalar_select 0, %s4, %s2
  // Predicated region
  $region2: #{tpu_custom_call.1} parent=0 // pred_check
    _
  $region3: #{tpu_custom_call.1} parent=0 // pred_check_branch
    %7 = sbr.rel (0) target = $region5
  $region4: #{tpu_custom_call.1} parent=0 // pred_region
    _
  $region5: #{tpu_custom_call.1} parent=0 // pred_fallthru
    _
  %v8 = vld [vmem:[%s0] sm:$0x3]
  %v10 = vrot.slane %v8, 1
  %v12 = vsub.f32 %v8, %v10
  %v13 = vxor.u32 %v12, 2147483648
  %v14 = vmul.f32 %v13, 1.442695
  %v15 = vpow.pop %v14
  %v16 = vadd.f32 %v15, 1.0
  %v17 = vrcp.pop %v16
  %v18 = vmul.f32 %v16, %v17
  %v19 = vsub.f32 1.0, %v18
  %v20 = vmul.f32 %v17, %v19
  %v21 = vadd.f32 %v17, %v20
  %vm22 = vweird.f32 %v16
  %vm23 = vweird.f32 %v17
  %vm24 = vmor %vm22, %vm23
  %v25 = vsel %vm24, %v17, %v21
  %v26 = vand.u32 2147483647, %v16
  %vm27 = vcmp.eq.f32.partialorder %v26, 8.507059e+37
  %v28 = vand.u32 %v16, 2147483648
  %v29 = vor.u32 1.1754944e-38, %v28
  %v30 = vsel %vm27, %v29, %v25
  %v31 = vmul.f32 1.0, %v30
  %v32 = vsub.f32 1.0, %v31
  %vm33 = vcmask 0
  %34 = vst.msk [vmem:[%s1] sm:$0x1] %vm33, %v31
  %35 = vst.msk [vmem:[%s1 + $0x1] sm:$0x1] %vm33, %v32
  // Predicated region
  $region6: #{tpu_custom_call.1} parent=0 // pred_check
    _
  $region7: #{tpu_custom_call.1} parent=0 // pred_check_branch
    %37 = sbr.rel (0) target = $region9
  $region8: #{tpu_custom_call.1} parent=0 // pred_region
    _
  $region9: #{tpu_custom_call.1} parent=0 // pred_fallthru
    _
  // Predicated region
  $region10: #{tpu_custom_call.1} parent=0 // pred_check
    _
  $region11: #{tpu_custom_call.1} parent=0 // pred_check_branch
    %39 = sbr.rel (0) target = $region13
  $region12: #{tpu_custom_call.1} parent=0 // pred_region
    _
  $region13: #{tpu_custom_call.1} parent=0 // pred_fallthru
    _

</llo_original>
